<compile_context>
chip_gen: v6e
topology: v6e:2x2x1
jax: 0.10.0
libtpu: 0.0.40
codegen_flags: <defaults>
</compile_context>

<pallas_src>
import math
import jax
import jax.numpy as jnp
from jax.experimental import pallas as pl
from jax.experimental.pallas import tpu as pltpu


def _eca_kernel_size(channel, b=1, gamma=2):
    k = int(abs((math.log(channel, 2) + b) / gamma))
    return k if k % 2 else k + 1


def _round_up(v, m):
    return (v + m - 1) // m * m


def _conv_matrix(w, C, pad):
    """A with A[o, i] = w[i - o + pad] so out = A @ v reproduces PyTorch
    Conv1d (cross-correlation, zero padding) along the channel axis."""
    k = w.shape[0]
    o = jnp.arange(C)[:, None]
    i = jnp.arange(C)[None, :]
    j = i - o + pad
    valid = (j >= 0) & (j < k)
    return jnp.where(valid, w[jnp.clip(j, 0, k - 1)], 0.0).astype(jnp.float32)


def _make_kernel(inv_hw):
    def kernel(x_ref, b1t_ref, b2t_ref, o_ref):
        x = x_ref[...]                                  # (nb, C, HW) f32
        # Adaptive max / avg pool over the (flattened) spatial axis.  The block
        # trailing dims equal the full array dims, so Mosaic masks any internal
        # lane padding in these reductions.
        mx = jnp.max(x, axis=-1)                        # (nb, C)
        av = jnp.sum(x, axis=-1) * inv_hw               # (nb, C)

        # Folded gate math: y = (conv3a.conv1) @ mx + (conv3b.conv2) @ av,
        # written as row-vectors times the pre-transposed matrices.
        y = (jnp.dot(mx, b1t_ref[...], preferred_element_type=jnp.float32)
             + jnp.dot(av, b2t_ref[...], preferred_element_type=jnp.float32))
        gate = jax.nn.sigmoid(y)                        # (nb, C)
        o_ref[...] = x * gate[:, :, None]               # broadcast over spatial

    return kernel


def aw_block(x, w1, w2, w3, *, target_block_bytes=2 * 1024 * 1024):
    """x: (N, C, H, W) float32. w1, w2: (k,), w3: (2, k)."""
    N, C, H, W = x.shape
    HW = H * W
    k = w1.shape[0]
    pad = (k - 1) // 2

    # --- fold the linear conv chain in the wrapper (parameter glue) ---------
    a1 = _conv_matrix(w1, C, pad)
    a2 = _conv_matrix(w2, C, pad)
    a3a = _conv_matrix(w3[0], C, pad)
    a3b = _conv_matrix(w3[1], C, pad)
    b1t = (a3a @ a1).T
    b2t = (a3b @ a2).T
    # TODO(synk): for very large C, replace the O(C^2) folded matrices with a
    # k-tap conv on the pooled vector inside the kernel (O(C*k) weights).

    # --- batch blocking: ~target_block_bytes of VMEM-resident data per step --
    per_batch_vmem = _round_up(C, 8) * _round_up(HW, 128) * 4
    nb = max(1, min(N, target_block_bytes // max(per_batch_vmem, 1)))
    grid = pl.cdiv(N, nb)   # partial last block handled by Pallas masking
    # TODO(synk): if one (C, HW) slab (double-buffered) no longer fits VMEM
    # (very large H*W), switch to a two-pass grid over HW tiles
    # (pass 1: running max/sum into scratch; pass 2: apply gate).

    x_flat = x.reshape(N, C, HW).astype(jnp.float32)    # contiguous reshape: free

    cost = pl.CostEstimate(
        flops=3 * N * C * HW + 4 * N * C * C,
        transcendentals=N * C,
        bytes_accessed=2 * N * C * HW * 4 + 2 * C * C * 4,
    )

    mat_spec = pl.BlockSpec((C, C), lambda i: (0, 0))

    out = pl.pallas_call(
        _make_kernel(1.0 / float(HW)),
        out_shape=jax.ShapeDtypeStruct((N, C, HW), jnp.float32),
        grid_spec=pltpu.PrefetchScalarGridSpec(
            num_scalar_prefetch=0,
            grid=(grid,),
            in_specs=[
                pl.BlockSpec((nb, C, HW), lambda i: (i, 0, 0)),
                mat_spec,
                mat_spec,
            ],
            out_specs=pl.BlockSpec((nb, C, HW), lambda i: (i, 0, 0)),
        ),
        compiler_params=pltpu.CompilerParams(
            dimension_semantics=("parallel",),
            vmem_limit_bytes=32 * 1024 * 1024,
        ),
        cost_estimate=cost,
    )(x_flat, b1t, b2t)

    return out.reshape(N, C, H, W)


def aw_block_ref(x, w1, w2, w3):
    """Pure-JAX reference mirroring the PyTorch forward (unfolded convs)."""
    N, C, H, W = x.shape
    k = w1.shape[0]
    pad = (k - 1) // 2

    def conv1d_c(v, w):  # v: (N, C), w: (k,)
        vp = jnp.pad(v, ((0, 0), (pad, pad)))
        out = jnp.zeros_like(v)
        for j in range(k):
            out = out + w[j] * vp[:, j:j + C]
        return out

    mx = x.max(axis=(2, 3))
    av = x.mean(axis=(2, 3))
    y1 = conv1d_c(mx, w1)
    y2 = conv1d_c(av, w2)
    y3 = conv1d_c(y1, w3[0]) + conv1d_c(y2, w3[1])
    g = jax.nn.sigmoid(y3)
    return x * g[:, :, None, None]


if __name__ == "__main__":
    root_key = jax.random.PRNGKey(0)

    def run_case(N, C, H, W, case_id):
        k = _eca_kernel_size(C)
        key = jax.random.fold_in(root_key, case_id)
        kx, k1, k2, k3 = jax.random.split(key, 4)

        x = jax.random.normal(kx, (N, C, H, W), dtype=jnp.float32)
        # PyTorch Conv1d default init: U(-1/sqrt(fan_in), 1/sqrt(fan_in)), bias=False.
        bnd1 = 1.0 / math.sqrt(1 * k)
        w1 = jax.random.uniform(k1, (k,), jnp.float32, -bnd1, bnd1)
        w2 = jax.random.uniform(k2, (k,), jnp.float32, -bnd1, bnd1)
        bnd3 = 1.0 / math.sqrt(2 * k)
        w3 = jax.random.uniform(k3, (2, k), jnp.float32, -bnd3, bnd3)

        out = jax.block_until_ready(aw_block(x, w1, w2, w3))
        ref = aw_block_ref(x, w1, w2, w3)
        assert out.shape == (N, C, H, W)
        assert jnp.allclose(out, ref, atol=1e-5, rtol=1e-5), \
            f"mismatch vs reference at shape {(N, C, H, W)}"

    run_case(2, 16, 16, 16, 0)   # lane-aligned HW = 256 (unmasked fast path)
    run_case(3, 8, 10, 10, 1)    # HW = 100 -> Mosaic-masked unaligned path

    print("KERNEL_OK")
</pallas_src>

<mosaic_0001>
module attributes {stable_mosaic.version = 11 : i64} {
  func.func @kernel(%arg0: i32, %arg1: memref<2x16x256xf32, #tpu.memory_space<vmem>>, %arg2: memref<16x16xf32, #tpu.memory_space<vmem>>, %arg3: memref<16x16xf32, #tpu.memory_space<vmem>>, %arg4: memref<2x16x256xf32, #tpu.memory_space<vmem>>) attributes {dimension_semantics = [#tpu.dimension_semantics<parallel>], iteration_bounds = array<i64: 1>, scalar_prefetch = 0 : i64, scratch_operands = 0 : i64, tpu.core_type = #tpu.core_type<tc>, window_params = [{transform_indices = @transform_0, window_bounds = array<i64: 2, 16, 256>}, {pipeline_mode = #tpu.pipeline_mode<synchronous>, transform_indices = @transform_1, window_bounds = array<i64: 16, 16>}, {pipeline_mode = #tpu.pipeline_mode<synchronous>, transform_indices = @transform_2, window_bounds = array<i64: 16, 16>}, {transform_indices = @transform_3, window_bounds = array<i64: 2, 16, 256>}]} {
    %c0 = arith.constant 0 : index
    %c0_0 = arith.constant 0 : index
    %c0_1 = arith.constant 0 : index
    %0 = vector.load %arg1[%c0, %c0_0, %c0_1] : memref<2x16x256xf32, #tpu.memory_space<vmem>>, vector<2x16x256xf32>
    %cst = arith.constant dense<0xFF800000> : vector<2x16xf32>
    %1 = vector.multi_reduction <maximumf>, %0, %cst [2] : vector<2x16x256xf32> to vector<2x16xf32>
    %cst_2 = arith.constant dense<0.000000e+00> : vector<2x16xf32>
    %2 = vector.multi_reduction <add>, %0, %cst_2 [2] : vector<2x16x256xf32> to vector<2x16xf32>
    %cst_3 = arith.constant 3.906250e-03 : f32
    %3 = vector.broadcast %cst_3 : f32 to vector<2x16xf32>
    %4 = arith.mulf %2, %3 : vector<2x16xf32>
    %c0_4 = arith.constant 0 : index
    %c0_5 = arith.constant 0 : index
    %5 = vector.load %arg2[%c0_4, %c0_5] : memref<16x16xf32, #tpu.memory_space<vmem>>, vector<16x16xf32>
    %cst_6 = arith.constant dense<0.000000e+00> : vector<2x16xf32>
    %6 = tpu.matmul %1, %5, %cst_6 {dimension_numbers = #tpu.dot_dimension_numbers<[1], [0], [0], [1], [0, 0, 1, 1], [], []>} : vector<2x16xf32>, vector<16x16xf32>, vector<2x16xf32> -> vector<2x16xf32>
    %c0_7 = arith.constant 0 : index
    %c0_8 = arith.constant 0 : index
    %7 = vector.load %arg3[%c0_7, %c0_8] : memref<16x16xf32, #tpu.memory_space<vmem>>, vector<16x16xf32>
    %cst_9 = arith.constant dense<0.000000e+00> : vector<2x16xf32>
    %8 = tpu.matmul %4, %7, %cst_9 {dimension_numbers = #tpu.dot_dimension_numbers<[1], [0], [0], [1], [0, 0, 1, 1], [], []>} : vector<2x16xf32>, vector<16x16xf32>, vector<2x16xf32> -> vector<2x16xf32>
    %9 = arith.addf %6, %8 : vector<2x16xf32>
    %10 = arith.negf %9 : vector<2x16xf32>
    %11 = math.exp %10 : vector<2x16xf32>
    %cst_10 = arith.constant 1.000000e+00 : f32
    %12 = vector.broadcast %cst_10 : f32 to vector<2x16xf32>
    %13 = arith.addf %12, %11 : vector<2x16xf32>
    %14 = arith.divf %12, %13 : vector<2x16xf32>
    %15 = vector.shape_cast %14 : vector<2x16xf32> to vector<2x16x1xf32>
    %16 = vector.broadcast %15 : vector<2x16x1xf32> to vector<2x16x256xf32>
    %17 = arith.mulf %0, %16 : vector<2x16x256xf32>
    %c0_11 = arith.constant 0 : index
    %c0_12 = arith.constant 0 : index
    %c0_13 = arith.constant 0 : index
    %18 = vector.load %arg4[%c0_11, %c0_12, %c0_13] : memref<2x16x256xf32, #tpu.memory_space<vmem>>, vector<2x16x256xf32>
    tpu.vector_store %arg4[%c0_11, %c0_12, %c0_13], %17 {strides = array<i32>} : memref<2x16x256xf32, #tpu.memory_space<vmem>>, vector<2x16x256xf32>,
    return
  }
  func.func @transform_0(%arg0: i32) -> (i32, i32, i32) {
    %c0_i32 = arith.constant 0 : i32
    %c0_i32_0 = arith.constant 0 : i32
    %c0_i32_1 = arith.constant 0 : i32
    return %arg0, %c0_i32, %c0_i32_0 : i32, i32, i32
  }
  func.func @transform_1(%arg0: i32) -> (i32, i32) {
    %c0_i32 = arith.constant 0 : i32
    %c0_i32_0 = arith.constant 0 : i32
    %c0_i32_1 = arith.constant 0 : i32
    return %c0_i32, %c0_i32_0 : i32, i32
  }
  func.func @transform_2(%arg0: i32) -> (i32, i32) {
    %c0_i32 = arith.constant 0 : i32
    %c0_i32_0 = arith.constant 0 : i32
    %c0_i32_1 = arith.constant 0 : i32
    return %c0_i32, %c0_i32_0 : i32, i32
  }
  func.func @transform_3(%arg0: i32) -> (i32, i32, i32) {
    %c0_i32 = arith.constant 0 : i32
    %c0_i32_0 = arith.constant 0 : i32
    %c0_i32_1 = arith.constant 0 : i32
    return %arg0, %c0_i32, %c0_i32_0 : i32, i32, i32
  }
}

</mosaic_0001>

<llo_original>
// kernel: tpu_custom_call.1
$region0: #{tpu_custom_call.1}
  #allocation0 [shape = 'u32[]', space=smem, size = 0x4, offset = 0x4, fixed_abs, tag = 'smem constant byte address 0x4 - core index']
  #allocation1 [shape = 'u32[144,128]{1,0:T(1,128)}', space=vmem, size = 0x12000, scoped, tag = 'internal scratch']
  %s0 = inlined_call_operand.hbm [shape: f32[2,16,256], index: 0, kind: input, shape index: {}]
  %s1 = inlined_call_operand.hbm [shape: f32[16,16], index: 1, kind: input, shape index: {}]
  %s2 = inlined_call_operand.hbm [shape: f32[16,16], index: 2, kind: input, shape index: {}]
  %s3 = inlined_call_operand.hbm [shape: f32[2,16,256], index: 3, kind: output, shape index: {}]
  %s4 = sld [smem:[#allocation0]]
  $region34: #{tpu_custom_call.1} parent=0
    _
  %s6 = ssub.s32 1, %s4
  %s7 = scalar_select 0, %s6, %s4
  $region1: #{tpu_custom_call.1} parent=0
    #allocation2 [shape = 'u8[32768]{0}', space=vmem, size = 0x8000, scoped, tag = 'input window, operand 0, single buffered']
    #allocation3 [shape = 's32[1]{0}', space=sflag, size = 0x4, scoped, tag = 'scoped memory for tpu_custom_call.1']
    #allocation4 [shape = 's32[1]{0}', space=sflag, size = 0x4, scoped, tag = 'scoped memory for tpu_custom_call.1']
    #allocation5 [shape = 'u8[8192]{0}', space=vmem, size = 0x2000, scoped, tag = 'input window, operand 1, single buffered']
    #allocation6 [shape = 's32[1]{0}', space=sflag, size = 0x4, scoped, tag = 'scoped memory for tpu_custom_call.1']
    #allocation7 [shape = 'u8[8192]{0}', space=vmem, size = 0x2000, scoped, tag = 'input window, operand 2, single buffered']
    #allocation8 [shape = 'u8[32768]{0}', space=vmem, size = 0x8000, scoped, tag = 'output window, operand 0, single buffered']
    %8 = vsyncpa [#allocation3], 0
    %9 = vsyncpa [#allocation6], 0
    %10 = vsyncpa [#allocation4], 0
    // Predicated region
    $region2: #{tpu_custom_call.1} parent=1 // pred_check
      _
    $region3: #{tpu_custom_call.1} parent=1 // pred_check_branch
      %12 = sbr.rel (0) target = $region5
    $region4: #{tpu_custom_call.1} parent=1 // pred_region
      %s14 = ssub.s32 1024, 1024
      %15 = vsyncadd [#allocation3], %s14
      %s16 = sshll.u32 [#allocation2], 4
      %s17 = int_to_ptr.vmem [resolvable:$true] %s16
      %22 = dma.hbm_to_vmem [thread:$0]  %s0, 1024, %s17, [#allocation3], 256, 256, 16
    $region5: #{tpu_custom_call.1} parent=1 // pred_fallthru
      _
    // Predicated region
    $region6: #{tpu_custom_call.1} parent=1 // pred_check
      _
    $region7: #{tpu_custom_call.1} parent=1 // pred_check_branch
      %24 = sbr.rel (0) target = $region9
    $region8: #{tpu_custom_call.1} parent=1 // pred_region
      %s26 = ssub.s32 256, 256
      %27 = vsyncadd [#allocation6], %s26
      %s28 = sshll.u32 [#allocation5], 4
      %s29 = int_to_ptr.vmem [resolvable:$true] %s28
      %34 = dma.hbm_to_vmem [thread:$0]  %s1, 256, %s29, [#allocation6], 128, 128, 8
    $region9: #{tpu_custom_call.1} parent=1 // pred_fallthru
      _
    // Predicated region
    $region10: #{tpu_custom_call.1} parent=1 // pred_check
      _
    $region11: #{tpu_custom_call.1} parent=1 // pred_check_branch
      %36 = sbr.rel (0) target = $region13
    $region12: #{tpu_custom_call.1} parent=1 // pred_region
      %s38 = ssub.s32 256, 256
      %39 = vsyncadd [#allocation6], %s38
      %s40 = sshll.u32 [#allocation7], 4
      %s41 = int_to_ptr.vmem [resolvable:$true] %s40
      %46 = dma.hbm_to_vmem [thread:$0]  %s2, 256, %s41, [#allocation6], 128, 128, 8
    $region13: #{tpu_custom_call.1} parent=1 // pred_fallthru
      _
    // Predicated region
    $region14: #{tpu_custom_call.1} parent=1 // pred_check
      _
    $region15: #{tpu_custom_call.1} parent=1 // pred_check_branch
      %48 = sbr.rel (0) target = $region17
    $region16: #{tpu_custom_call.1} parent=1 // pred_region
      %49 = dma.done [#allocation3], 1024
    $region17: #{tpu_custom_call.1} parent=1 // pred_fallthru
      _
    // Predicated region
    $region18: #{tpu_custom_call.1} parent=1 // pred_check
      _
    $region19: #{tpu_custom_call.1} parent=1 // pred_check_branch
      %51 = sbr.rel (0) target = $region21
    $region20: #{tpu_custom_call.1} parent=1 // pred_region
      %52 = dma.done [#allocation6], 256
    $region21: #{tpu_custom_call.1} parent=1 // pred_fallthru
      _
    // Predicated region
    $region22: #{tpu_custom_call.1} parent=1 // pred_check
      _
    $region23: #{tpu_custom_call.1} parent=1 // pred_check_branch
      %54 = sbr.rel (0) target = $region25
    $region24: #{tpu_custom_call.1} parent=1 // pred_region
      %55 = dma.done [#allocation6], 256
    $region25: #{tpu_custom_call.1} parent=1 // pred_fallthru
      _
    %v56 = vld [vmem:[#allocation2] sm:$0xff]
    %v57 = vld [vmem:[#allocation2 + $0x8] sm:$0xff]
    %v58 = vld [vmem:[#allocation2 + $0x10] sm:$0xff]
    %v59 = vld [vmem:[#allocation2 + $0x18] sm:$0xff]
    %v60 = vld [vmem:[#allocation2 + $0x20] sm:$0xff]
    %v61 = vld [vmem:[#allocation2 + $0x28] sm:$0xff]
    %v62 = vld [vmem:[#allocation2 + $0x30] sm:$0xff]
    %v63 = vld [vmem:[#allocation2 + $0x38] sm:$0xff]
    %v64 = vmax.f32 %v56, %v57
    %65 = vmax.xlane.f32.xlu0 %v64
    %v66 = vpop.xlane.xlu0 %65
    %v67 = vmax.f32 %v58, %v59
    %68 = vmax.xlane.f32.xlu0 %v67
    %v69 = vpop.xlane.xlu0 %68
    %v70 = vmax.f32 %v60, %v61
    %71 = vmax.xlane.f32.xlu0 %v70
    %v72 = vpop.xlane.xlu0 %71
    %v73 = vmax.f32 %v62, %v63
    %74 = vmax.xlane.f32.xlu0 %v73
    %v75 = vpop.xlane.xlu0 %74
    %v76 = vadd.f32 %v56, %v57
    %77 = vadd.xlane.f32.xlu0 %v76
    %v78 = vpop.xlane.xlu0 %77
    %v79 = vadd.f32 %v58, %v59
    %80 = vadd.xlane.f32.xlu0 %v79
    %v81 = vpop.xlane.xlu0 %80
    %v82 = vadd.f32 %v60, %v61
    %83 = vadd.xlane.f32.xlu0 %v82
    %v84 = vpop.xlane.xlu0 %83
    %v85 = vadd.f32 %v62, %v63
    %86 = vadd.xlane.f32.xlu0 %v85
    %v87 = vpop.xlane.xlu0 %86
    %v88 = vmul.f32 %v78, 0.00390625
    %v89 = vmul.f32 %v81, 0.00390625
    %v90 = vmul.f32 %v84, 0.00390625
    %v91 = vmul.f32 %v87, 0.00390625
    %v92 = vld [vmem:[#allocation5] sm:$0xff]
    %v93 = vld [vmem:[#allocation5 + $0x8] sm:$0xff]
    %v94 = vld [vmem:[#allocation7] sm:$0xff]
    %v95 = vld [vmem:[#allocation7 + $0x8] sm:$0xff]
    %v100 = vlaneseq
    %v101 = vand.u32 %v100, 127
    %v102 = vlaneseq
    %v103 = vshrl.u32 %v102, 7
    %v104 = vsub.s32 %v101, %v103
    %v105 = vrot.slane %v88, %v104
    %v106 = vadd.s32 %v101, 4294967288
    %v107 = vlaneseq
    %v108 = vshrl.u32 %v107, 7
    %v109 = vsub.s32 %v106, %v108
    %v110 = vrot.slane %v89, %v109
    %vm111 = vcmask 130112
    %v112 = vsel %vm111, %v110, %v105
    %v113 = vlaneseq
    %v114 = vshrl.u32 %v113, 7
    %v115 = vsub.s32 %v101, %v114
    %v116 = vrot.slane %v90, %v115
    %v117 = vlaneseq
    %v118 = vshrl.u32 %v117, 7
    %v119 = vsub.s32 %v106, %v118
    %v120 = vrot.slane %v91, %v119
    %v121 = vsel %vm111, %v120, %v116
    %vm122 = vcmask 1041409
    %v123 = vsel %vm122, %v121, %v112
    %vm124 = vcmask 130048
    %v125 = vsel %vm124, %v123, 0
    %127 = vmatprep.subr.mxu0 0.0
    %128 = vmatpush1.msra.mxu0 0.0
    %129 = vmatprep.subr.mxu0 0.0
    %130 = vmatpush1.msra.mxu0 0.0
    %131 = vmatprep.subr.mxu0 0.0
    %132 = vmatpush1.msra.mxu0 0.0
    %133 = vmatprep.subr.mxu0 0.0
    %134 = vmatpush1.msra.mxu0 0.0
    %135 = vmatprep.subr.mxu0 0.0
    %136 = vmatpush1.msra.mxu0 0.0
    %137 = vmatprep.subr.mxu0 0.0
    %138 = vmatpush1.msra.mxu0 0.0
    %139 = vmatprep.subr.mxu0 0.0
    %140 = vmatpush1.msra.mxu0 0.0
    %141 = vmatprep.subr.mxu0 0.0
    %142 = vmatpush1.msra.mxu0 0.0
    %143 = vmatprep.subr.mxu0 0.0
    %144 = vmatpush1.msra.mxu0 0.0
    %145 = vmatprep.subr.mxu0 0.0
    %146 = vmatpush1.msra.mxu0 0.0
    %147 = vmatprep.subr.mxu0 0.0
    %148 = vmatpush1.msra.mxu0 0.0
    %149 = vmatprep.subr.mxu0 0.0
    %150 = vmatpush1.msra.mxu0 0.0
    %151 = vmatprep.subr.mxu0 0.0
    %152 = vmatpush1.msra.mxu0 0.0
    %153 = vmatprep.subr.mxu0 0.0
    %154 = vmatpush1.msra.mxu0 0.0
    %155 = vmatprep.subr.mxu0 0.0
    %156 = vmatpush1.msra.mxu0 %v95
    %157 = vmatprep.subr.mxu0 0.0
    %158 = vmatpush1.msra.mxu0 %v94
    %159 = vmatprep.subr.mxu0 0.0
    %160 = vmatpush2.msra.mxu0 0.0
    %161 = vmatprep.subr.mxu0 0.0
    %162 = vmatpush2.msra.mxu0 0.0
    %163 = vmatprep.subr.mxu0 0.0
    %164 = vmatpush2.msra.mxu0 0.0
    %165 = vmatprep.subr.mxu0 0.0
    %166 = vmatpush2.msra.mxu0 0.0
    %167 = vmatprep.subr.mxu0 0.0
    %168 = vmatpush2.msra.mxu0 0.0
    %169 = vmatprep.subr.mxu0 0.0
    %170 = vmatpush2.msra.mxu0 0.0
    %171 = vmatprep.subr.mxu0 0.0
    %172 = vmatpush2.msra.mxu0 0.0
    %173 = vmatprep.subr.mxu0 0.0
    %174 = vmatpush2.msra.mxu0 0.0
    %175 = vmatprep.subr.mxu0 0.0
    %176 = vmatpush2.msra.mxu0 0.0
    %177 = vmatprep.subr.mxu0 0.0
    %178 = vmatpush2.msra.mxu0 0.0
    %179 = vmatprep.subr.mxu0 0.0
    %180 = vmatpush2.msra.mxu0 0.0
    %181 = vmatprep.subr.mxu0 0.0
    %182 = vmatpush2.msra.mxu0 0.0
    %183 = vmatprep.subr.mxu0 0.0
    %184 = vmatpush2.msra.mxu0 0.0
    %185 = vmatprep.subr.mxu0 0.0
    %186 = vmatpush2.msra.mxu0 0.0
    %187 = vmatprep.subr.mxu0 0.0
    %188 = vmatpush2.msra.mxu0 0.0
    %189 = vmatprep.subr.mxu0 0.0
    %190 = vmatpush2.msra.mxu0 0.0
    %191 = vmatprep.mubr.f32.mxu0 0.0
    %192 = vmatmul.mubr.f32.gmra.mxu0 %v125
    %v193 = vpop.f32.mrf.mxu0
    %v194 = vadd.f32 0.0, %v193
    %v195 = vpop.f32.mrf.mxu0
    %196 = vdwg.mxu0
    %v201 = vlaneseq
    %v202 = vshrl.u32 %v201, 7
    %v203 = vsub.s32 %v101, %v202
    %v204 = vrot.slane %v66, %v203
    %v205 = vlaneseq
    %v206 = vshrl.u32 %v205, 7
    %v207 = vsub.s32 %v106, %v206
    %v208 = vrot.slane %v69, %v207
    %v209 = vsel %vm111, %v208, %v204
    %v210 = vlaneseq
    %v211 = vshrl.u32 %v210, 7
    %v212 = vsub.s32 %v101, %v211
    %v213 = vrot.slane %v72, %v212
    %v214 = vlaneseq
    %v215 = vshrl.u32 %v214, 7
    %v216 = vsub.s32 %v106, %v215
    %v217 = vrot.slane %v75, %v216
    %v218 = vsel %vm111, %v217, %v213
    %v219 = vsel %vm122, %v218, %v209
    %v220 = vsel %vm124, %v219, 0
    %222 = vmatprep.subr.mxu0 0.0
    %223 = vmatpush1.msra.mxu0 0.0
    %224 = vmatprep.subr.mxu0 0.0
    %225 = vmatpush1.msra.mxu0 0.0
    %226 = vmatprep.subr.mxu0 0.0
    %227 = vmatpush1.msra.mxu0 0.0
    %228 = vmatprep.subr.mxu0 0.0
    %229 = vmatpush1.msra.mxu0 0.0
    %230 = vmatprep.subr.mxu0 0.0
    %231 = vmatpush1.msra.mxu0 0.0
    %232 = vmatprep.subr.mxu0 0.0
    %233 = vmatpush1.msra.mxu0 0.0
    %234 = vmatprep.subr.mxu0 0.0
    %235 = vmatpush1.msra.mxu0 0.0
    %236 = vmatprep.subr.mxu0 0.0
    %237 = vmatpush1.msra.mxu0 0.0
    %238 = vmatprep.subr.mxu0 0.0
    %239 = vmatpush1.msra.mxu0 0.0
    %240 = vmatprep.subr.mxu0 0.0
    %241 = vmatpush1.msra.mxu0 0.0
    %242 = vmatprep.subr.mxu0 0.0
    %243 = vmatpush1.msra.mxu0 0.0
    %244 = vmatprep.subr.mxu0 0.0
    %245 = vmatpush1.msra.mxu0 0.0
    %246 = vmatprep.subr.mxu0 0.0
    %247 = vmatpush1.msra.mxu0 0.0
    %248 = vmatprep.subr.mxu0 0.0
    %249 = vmatpush1.msra.mxu0 0.0
    %250 = vmatprep.subr.mxu0 0.0
    %251 = vmatpush1.msra.mxu0 %v93
    %252 = vmatprep.subr.mxu0 0.0
    %253 = vmatpush1.msra.mxu0 %v92
    %254 = vmatprep.subr.mxu0 0.0
    %255 = vmatpush2.msra.mxu0 0.0
    %256 = vmatprep.subr.mxu0 0.0
    %257 = vmatpush2.msra.mxu0 0.0
    %258 = vmatprep.subr.mxu0 0.0
    %259 = vmatpush2.msra.mxu0 0.0
    %260 = vmatprep.subr.mxu0 0.0
    %261 = vmatpush2.msra.mxu0 0.0
    %262 = vmatprep.subr.mxu0 0.0
    %263 = vmatpush2.msra.mxu0 0.0
    %264 = vmatprep.subr.mxu0 0.0
    %265 = vmatpush2.msra.mxu0 0.0
    %266 = vmatprep.subr.mxu0 0.0
    %267 = vmatpush2.msra.mxu0 0.0
    %268 = vmatprep.subr.mxu0 0.0
    %269 = vmatpush2.msra.mxu0 0.0
    %270 = vmatprep.subr.mxu0 0.0
    %271 = vmatpush2.msra.mxu0 0.0
    %272 = vmatprep.subr.mxu0 0.0
    %273 = vmatpush2.msra.mxu0 0.0
    %274 = vmatprep.subr.mxu0 0.0
    %275 = vmatpush2.msra.mxu0 0.0
    %276 = vmatprep.subr.mxu0 0.0
    %277 = vmatpush2.msra.mxu0 0.0
    %278 = vmatprep.subr.mxu0 0.0
    %279 = vmatpush2.msra.mxu0 0.0
    %280 = vmatprep.subr.mxu0 0.0
    %281 = vmatpush2.msra.mxu0 0.0
    %282 = vmatprep.subr.mxu0 0.0
    %283 = vmatpush2.msra.mxu0 0.0
    %284 = vmatprep.subr.mxu0 0.0
    %285 = vmatpush2.msra.mxu0 0.0
    %286 = vmatprep.mubr.f32.mxu0 0.0
    %287 = vmatmul.mubr.f32.gmra.mxu0 %v220
    %v288 = vpop.f32.mrf.mxu0
    %v289 = vadd.f32 %v194, %v288
    %v290 = vpop.f32.mrf.mxu0
    %291 = vdwg.mxu0
    %v292 = vxor.u32 %v289, 2147483648
    %v293 = vmul.f32 %v292, 1.442695
    %v294 = vpow.pop %v293
    %v295 = vadd.f32 %v294, 1.0
    %v296 = vrcp.pop %v295
    %v297 = vmul.f32 1.0, %v296
    %v298 = vlaneseq
    %v299 = vshrl.u32 %v298, 7
    %v300 = vsub.s32 0, %v299
    %v301 = vrot.slane %v297, %v300
    %303 = vbcast.lane.b32.xlu0 %v301, 256
    %v304 = vpop.permute.xlu0 %303
    %s306 = sor.u32 256, 8
    %307 = vbcast.lane.b32.xlu0 %v301, %s306
    %v308 = vpop.permute.xlu0 %307
    %v309 = vlaneseq
    %v310 = vshrl.u32 %v309, 7
    %v311 = vsub.s32 1, %v310
    %v312 = vrot.slane %v297, %v311
    %314 = vbcast.lane.b32.xlu0 %v312, 256
    %v315 = vpop.permute.xlu0 %314
    %s317 = sor.u32 256, 8
    %318 = vbcast.lane.b32.xlu0 %v312, %s317
    %v319 = vpop.permute.xlu0 %318
    %v320 = vmul.f32 %v56, %v304
    %v321 = vmul.f32 %v57, %v304
    %v322 = vmul.f32 %v58, %v308
    %v323 = vmul.f32 %v59, %v308
    %v324 = vmul.f32 %v60, %v315
    %v325 = vmul.f32 %v61, %v315
    %v326 = vmul.f32 %v62, %v319
    %v327 = vmul.f32 %v63, %v319
    %328 = vst [vmem:[#allocation8] sm:$0xff] %v320
    %329 = vst [vmem:[#allocation8 + $0x8] sm:$0xff] %v321
    %330 = vst [vmem:[#allocation8 + $0x10] sm:$0xff] %v322
    %331 = vst [vmem:[#allocation8 + $0x18] sm:$0xff] %v323
    %332 = vst [vmem:[#allocation8 + $0x20] sm:$0xff] %v324
    %333 = vst [vmem:[#allocation8 + $0x28] sm:$0xff] %v325
    %334 = vst [vmem:[#allocation8 + $0x30] sm:$0xff] %v326
    %335 = vst [vmem:[#allocation8 + $0x38] sm:$0xff] %v327
    // Predicated region
    $region26: #{tpu_custom_call.1} parent=1 // pred_check
      _
    $region27: #{tpu_custom_call.1} parent=1 // pred_check_branch
      %337 = sbr.rel (0) target = $region29
    $region28: #{tpu_custom_call.1} parent=1 // pred_region
      %s339 = ssub.s32 1024, 1024
      %340 = vsyncadd [#allocation4], %s339
      %s341 = sshll.u32 [#allocation8], 4
      %s342 = int_to_ptr.vmem [resolvable:$true] %s341
      %347 = dma.vmem_to_hbm [thread:$0]  %s342, 1024, %s3, [#allocation4], 256, 256, 16
    $region29: #{tpu_custom_call.1} parent=1 // pred_fallthru
      _
    // Predicated region
    $region30: #{tpu_custom_call.1} parent=1 // pred_check
      _
    $region31: #{tpu_custom_call.1} parent=1 // pred_check_branch
      %349 = sbr.rel (0) target = $region33
    $region32: #{tpu_custom_call.1} parent=1 // pred_region
      %350 = dma.done [#allocation4], 1024
    $region33: #{tpu_custom_call.1} parent=1 // pred_fallthru
      _
    %351 = vsyncpa [#allocation3], 1
    %352 = vsyncpa [#allocation6], 1
    %353 = vsyncpa [#allocation4], 1

</llo_original>
